<compile_context>
chip_gen: v7x
topology: tpu7x:2x2x1
jax: 0.10.0
libtpu: 0.0.40
codegen_flags: <defaults>
</compile_context>

<pallas_src>
import jax
import jax.numpy as jnp
from jax.experimental import pallas as pl
from jax.experimental.pallas import tpu as pltpu


# ---------------------------------------------------------------------------
# Tiled Linear:  y = x @ W^T + b   (W passed in PyTorch (N, K) convention,
# pre-transposed to (K, N) in the wrapper for a canonical MXU contraction).
# ---------------------------------------------------------------------------
def _linear_kernel(x_ref, w_ref, b_ref, o_ref, acc_ref):
    k = pl.program_id(2)

    @pl.when(k == 0)
    def _():
        acc_ref[...] = jnp.zeros_like(acc_ref)

    acc_ref[...] += jnp.dot(x_ref[...], w_ref[...],
                            preferred_element_type=jnp.float32)

    @pl.when(k == pl.num_programs(2) - 1)
    def _():
        # Bias add only in the finalize step (K is a reduction axis).
        o_ref[...] = (acc_ref[...] + b_ref[...]).astype(o_ref.dtype)


def _round_up(x, m):
    return (x + m - 1) // m * m


def _pick_tile(dim_padded, max_tile):
    # dim_padded is a multiple of 128; largest 128-multiple tile that divides it.
    t = min(max_tile, dim_padded)
    while dim_padded % t != 0:
        t -= 128
    return t


def linear(x, weight, bias, *, tm_max=256, tn_max=512, tk_max=512):
    """x: (M, K); weight: (N, K) [PyTorch nn.Linear]; bias: (N,) -> (M, N)."""
    M, K = x.shape
    N, K2 = weight.shape
    assert K == K2 and bias.shape == (N,)

    w_t = weight.T                                   # (K, N): lane-dense output

    # Pad to multiples of 128 so tiles are MXU / lane aligned (unmasked vst).
    Mp, Kp, Np = _round_up(M, 128), _round_up(K, 128), _round_up(N, 128)
    x_p = jnp.pad(x, ((0, Mp - M), (0, Kp - K)))
    w_p = jnp.pad(w_t, ((0, Kp - K), (0, Np - N)))
    b_p = jnp.pad(bias, (0, Np - N)).reshape(1, Np)

    tm = _pick_tile(Mp, tm_max)
    tn = _pick_tile(Np, tn_max)
    tk = _pick_tile(Kp, tk_max)

    out_p = pl.pallas_call(
        _linear_kernel,
        out_shape=jax.ShapeDtypeStruct((Mp, Np), x.dtype),
        grid_spec=pltpu.PrefetchScalarGridSpec(
            num_scalar_prefetch=0,
            grid=(Mp // tm, Np // tn, Kp // tk),
            in_specs=[
                pl.BlockSpec((tm, tk), lambda i, j, k: (i, k)),
                pl.BlockSpec((tk, tn), lambda i, j, k: (k, j)),
                pl.BlockSpec((1, tn), lambda i, j, k: (0, j)),
            ],
            out_specs=pl.BlockSpec((tm, tn), lambda i, j, k: (i, j)),
            scratch_shapes=[pltpu.VMEM((tm, tn), jnp.float32)],
        ),
        compiler_params=pltpu.CompilerParams(
            dimension_semantics=("parallel", "parallel", "arbitrary"),
        ),
        cost_estimate=pl.CostEstimate(
            flops=2 * M * N * K,
            transcendentals=0,
            bytes_accessed=4 * (M * K + K * N + M * N),
        ),
    )(x_p, w_p, b_p)
    return out_p[:M, :N]


# ---------------------------------------------------------------------------
# Single LSTM layer over a full sequence.  Time-major (T, B, D) in/out.
# Grid iterates over time; h/c live in f32 VMEM scratch across grid steps.
# ---------------------------------------------------------------------------
def _lstm_layer_kernel(x_ref, wih_ref, whh_ref, b_ref, h0_ref, c0_ref,
                       y_ref, hN_ref, cN_ref, h_sc, c_sc):
    t = pl.program_id(0)
    H = h_sc.shape[-1]

    @pl.when(t == 0)
    def _():
        h_sc[...] = h0_ref[...].astype(jnp.float32)
        c_sc[...] = c0_ref[...].astype(jnp.float32)

    x = x_ref[0].astype(jnp.float32)                 # (B, D_in)
    h = h_sc[...]                                    # (B, H)

    # gates = x @ Wih^T + h @ Whh^T + (b_ih + b_hh); weights pre-transposed.
    gates = (jnp.dot(x, wih_ref[...], preferred_element_type=jnp.float32)
             + jnp.dot(h, whh_ref[...], preferred_element_type=jnp.float32)
             + b_ref[...])                           # (B, 4H), order i,f,g,o

    i_g = jax.nn.sigmoid(gates[:, 0 * H:1 * H])
    f_g = jax.nn.sigmoid(gates[:, 1 * H:2 * H])
    g_g = jnp.tanh(gates[:, 2 * H:3 * H])
    o_g = jax.nn.sigmoid(gates[:, 3 * H:4 * H])

    c_new = f_g * c_sc[...] + i_g * g_g
    h_new = o_g * jnp.tanh(c_new)

    h_sc[...] = h_new
    c_sc[...] = c_new

    y_ref[0] = h_new.astype(y_ref.dtype)
    hN_ref[...] = h_new.astype(hN_ref.dtype)
    cN_ref[...] = c_new.astype(cN_ref.dtype)


def lstm_layer(x_tbd, w_ih, w_hh, b_ih, b_hh, h0, c0):
    """x_tbd: (T, B, D_in) time-major.  w_ih: (4H, D_in), w_hh: (4H, H)."""
    T, B, Din = x_tbd.shape
    H4 = w_ih.shape[0]
    H = H4 // 4

    wih_t = w_ih.T                                   # (D_in, 4H)
    whh_t = w_hh.T                                   # (H,   4H)
    b = (b_ih + b_hh).reshape(1, H4)

    return pl.pallas_call(
        _lstm_layer_kernel,
        out_shape=(
            jax.ShapeDtypeStruct((T, B, H), x_tbd.dtype),
            jax.ShapeDtypeStruct((B, H), x_tbd.dtype),
            jax.ShapeDtypeStruct((B, H), x_tbd.dtype),
        ),
        grid_spec=pltpu.PrefetchScalarGridSpec(
            num_scalar_prefetch=0,
            grid=(T,),
            in_specs=[
                pl.BlockSpec((1, B, Din), lambda t: (t, 0, 0)),
                pl.BlockSpec((Din, H4), lambda t: (0, 0)),
                pl.BlockSpec((H, H4), lambda t: (0, 0)),
                pl.BlockSpec((1, H4), lambda t: (0, 0)),
                pl.BlockSpec((B, H), lambda t: (0, 0)),
                pl.BlockSpec((B, H), lambda t: (0, 0)),
            ],
            out_specs=(
                pl.BlockSpec((1, B, H), lambda t: (t, 0, 0)),
                pl.BlockSpec((B, H), lambda t: (0, 0)),
                pl.BlockSpec((B, H), lambda t: (0, 0)),
            ),
            scratch_shapes=[
                pltpu.VMEM((B, H), jnp.float32),
                pltpu.VMEM((B, H), jnp.float32),
            ],
        ),
        compiler_params=pltpu.CompilerParams(
            # Recurrence: h/c carried in scratch -> time axis must be sequential.
            dimension_semantics=("arbitrary",),
        ),
    )(x_tbd, wih_t, whh_t, b, h0, c0)


# ---------------------------------------------------------------------------
# Full StarDecoderLayer forward.
# ---------------------------------------------------------------------------
def star_decoder_layer(inputs, lstm_params, fc_weight, fc_bias, state=None):
    """inputs: (B, T, input_size) batch_first.
    lstm_params: list of (w_ih, w_hh, b_ih, b_hh) per layer (PyTorch shapes).
    Returns (output (B,T,input_size), h_n (L,B,H), c_n (L,B,H))."""
    del state  # TODO(synk): the reference forward ignores `state` (zero-init LSTM).
    B, T, _ = inputs.shape
    x = jnp.transpose(inputs, (1, 0, 2))             # time-major (T, B, D)

    hs, cs = [], []
    for (w_ih, w_hh, b_ih, b_hh) in lstm_params:
        H = w_hh.shape[1]
        h0 = jnp.zeros((B, H), inputs.dtype)
        c0 = jnp.zeros((B, H), inputs.dtype)
        x, h_n, c_n = lstm_layer(x, w_ih, w_hh, b_ih, b_hh, h0, c0)
        hs.append(h_n)
        cs.append(c_n)
        # TODO(synk): inter-layer dropout is an inference no-op; not applied.
    h_n = jnp.stack(hs, axis=0)
    c_n = jnp.stack(cs, axis=0)

    H = x.shape[-1]
    y = linear(x.reshape(T * B, H), fc_weight, fc_bias)       # (T*B, input_size)
    out = jnp.transpose(y.reshape(T, B, -1), (1, 0, 2))        # (B, T, input_size)
    return out, h_n, c_n


# ---------------------------------------------------------------------------
# Pure-JAX reference (PyTorch LSTM semantics) for correctness checking.
# ---------------------------------------------------------------------------
def _ref_forward(inputs, lstm_params, fc_weight, fc_bias):
    hi = jax.lax.Precision.HIGHEST
    B, T, _ = inputs.shape
    layer_in = inputs
    hs, cs = [], []
    for (w_ih, w_hh, b_ih, b_hh) in lstm_params:
        H = w_hh.shape[1]
        h = jnp.zeros((B, H), jnp.float32)
        c = jnp.zeros((B, H), jnp.float32)
        outs = []
        for t in range(T):
            xt = layer_in[:, t, :]
            g = (jnp.dot(xt, w_ih.T, precision=hi) + b_ih
                 + jnp.dot(h, w_hh.T, precision=hi) + b_hh)
            i_g = jax.nn.sigmoid(g[:, 0 * H:1 * H])
            f_g = jax.nn.sigmoid(g[:, 1 * H:2 * H])
            g_g = jnp.tanh(g[:, 2 * H:3 * H])
            o_g = jax.nn.sigmoid(g[:, 3 * H:4 * H])
            c = f_g * c + i_g * g_g
            h = o_g * jnp.tanh(c)
            outs.append(h)
        layer_in = jnp.stack(outs, axis=1)
        hs.append(h)
        cs.append(c)
    out = jnp.dot(layer_in.reshape(B * T, -1), fc_weight.T, precision=hi) + fc_bias
    return out.reshape(B, T, -1), jnp.stack(hs, 0), jnp.stack(cs, 0)


if __name__ == "__main__":
    key = jax.random.PRNGKey(0)

    batch = 2
    seq = 8
    input_size = 16
    hidden_size = 32
    num_layers = 2

    key, kx = jax.random.split(key)
    inputs = jax.random.normal(kx, (batch, seq, input_size), dtype=jnp.float32)

    # LSTM parameters (PyTorch shapes / init bounds).
    lstm_params = []
    for layer in range(num_layers):
        d_in = input_size if layer == 0 else hidden_size
        bound = 1.0 / (hidden_size ** 0.5)
        key, k1, k2, k3, k4 = jax.random.split(key, 5)
        w_ih = jax.random.uniform(k1, (4 * hidden_size, d_in),
                                  minval=-bound, maxval=bound, dtype=jnp.float32)
        w_hh = jax.random.uniform(k2, (4 * hidden_size, hidden_size),
                                  minval=-bound, maxval=bound, dtype=jnp.float32)
        b_ih = jax.random.uniform(k3, (4 * hidden_size,),
                                  minval=-bound, maxval=bound, dtype=jnp.float32)
        b_hh = jax.random.uniform(k4, (4 * hidden_size,),
                                  minval=-bound, maxval=bound, dtype=jnp.float32)
        lstm_params.append((w_ih, w_hh, b_ih, b_hh))

    # FC parameters: Linear(hidden_size -> input_size).
    fbound = 1.0 / (hidden_size ** 0.5)
    key, kw, kb = jax.random.split(key, 3)
    fc_weight = jax.random.uniform(kw, (input_size, hidden_size),
                                   minval=-fbound, maxval=fbound, dtype=jnp.float32)
    fc_bias = jax.random.uniform(kb, (input_size,),
                                 minval=-fbound, maxval=fbound, dtype=jnp.float32)

    out, h_n, c_n = star_decoder_layer(inputs, lstm_params, fc_weight, fc_bias)
    out, h_n, c_n = jax.block_until_ready((out, h_n, c_n))

    ref_out, ref_h, ref_c = _ref_forward(inputs, lstm_params, fc_weight, fc_bias)

    assert out.shape == (batch, seq, input_size)
    assert h_n.shape == (num_layers, batch, hidden_size)
    assert c_n.shape == (num_layers, batch, hidden_size)
    assert jnp.allclose(out, ref_out, atol=5e-4, rtol=5e-4), "output mismatch"
    assert jnp.allclose(h_n, ref_h, atol=5e-4, rtol=5e-4), "h_n mismatch"
    assert jnp.allclose(c_n, ref_c, atol=5e-4, rtol=5e-4), "c_n mismatch"

    print("KERNEL_OK")
</pallas_src>

<mosaic_0001>
module attributes {stable_mosaic.version = 11 : i64} {
  func.func @_lstm_layer_kernel(%arg0: i32, %arg1: memref<1x2x16xf32, #tpu.memory_space<vmem>>, %arg2: memref<16x128xf32, #tpu.memory_space<vmem>>, %arg3: memref<32x128xf32, #tpu.memory_space<vmem>>, %arg4: memref<1x128xf32, #tpu.memory_space<vmem>>, %arg5: memref<2x32xf32, #tpu.memory_space<vmem>>, %arg6: memref<2x32xf32, #tpu.memory_space<vmem>>, %arg7: memref<1x2x32xf32, #tpu.memory_space<vmem>>, %arg8: memref<2x32xf32, #tpu.memory_space<vmem>>, %arg9: memref<2x32xf32, #tpu.memory_space<vmem>>, %arg10: memref<2x32xf32, #tpu.memory_space<vmem>>, %arg11: memref<2x32xf32, #tpu.memory_space<vmem>>) attributes {dimension_semantics = [#tpu.dimension_semantics<arbitrary>], iteration_bounds = array<i64: 8>, scalar_prefetch = 0 : i64, scratch_operands = 2 : i64, tpu.core_type = #tpu.core_type<tc>, window_params = [{transform_indices = @transform_0, window_bounds = array<i64: 1, 2, 16>}, {pipeline_mode = #tpu.pipeline_mode<synchronous>, transform_indices = @transform_1, window_bounds = array<i64: 16, 128>}, {pipeline_mode = #tpu.pipeline_mode<synchronous>, transform_indices = @transform_2, window_bounds = array<i64: 32, 128>}, {pipeline_mode = #tpu.pipeline_mode<synchronous>, transform_indices = @transform_3, window_bounds = array<i64: 1, 128>}, {pipeline_mode = #tpu.pipeline_mode<synchronous>, transform_indices = @transform_4, window_bounds = array<i64: 2, 32>}, {pipeline_mode = #tpu.pipeline_mode<synchronous>, transform_indices = @transform_5, window_bounds = array<i64: 2, 32>}, {transform_indices = @transform_6, window_bounds = array<i64: 1, 2, 32>}, {pipeline_mode = #tpu.pipeline_mode<synchronous>, transform_indices = @transform_7, window_bounds = array<i64: 2, 32>}, {pipeline_mode = #tpu.pipeline_mode<synchronous>, transform_indices = @transform_8, window_bounds = array<i64: 2, 32>}]} {
    %c0_i32 = arith.constant 0 : i32
    %0 = arith.cmpi eq, %arg0, %c0_i32 : i32
    %1 = arith.extui %0 : i1 to i32
    %c0_i32_0 = arith.constant 0 : i32
    %2 = arith.cmpi ne, %1, %c0_i32_0 : i32
    scf.if %2 {
      %c0_28 = arith.constant 0 : index
      %c0_29 = arith.constant 0 : index
      %47 = vector.load %arg5[%c0_28, %c0_29] : memref<2x32xf32, #tpu.memory_space<vmem>>, vector<2x32xf32>
      %c0_30 = arith.constant 0 : index
      %c0_31 = arith.constant 0 : index
      %48 = vector.load %arg10[%c0_30, %c0_31] : memref<2x32xf32, #tpu.memory_space<vmem>>, vector<2x32xf32>
      tpu.vector_store %arg10[%c0_30, %c0_31], %47 {strides = array<i32>} : memref<2x32xf32, #tpu.memory_space<vmem>>, vector<2x32xf32>,
      %c0_32 = arith.constant 0 : index
      %c0_33 = arith.constant 0 : index
      %49 = vector.load %arg6[%c0_32, %c0_33] : memref<2x32xf32, #tpu.memory_space<vmem>>, vector<2x32xf32>
      %c0_34 = arith.constant 0 : index
      %c0_35 = arith.constant 0 : index
      %50 = vector.load %arg11[%c0_34, %c0_35] : memref<2x32xf32, #tpu.memory_space<vmem>>, vector<2x32xf32>
      tpu.vector_store %arg11[%c0_34, %c0_35], %49 {strides = array<i32>} : memref<2x32xf32, #tpu.memory_space<vmem>>, vector<2x32xf32>,
    } else {
    }
    %c0 = arith.constant 0 : index
    %c0_1 = arith.constant 0 : index
    %c0_2 = arith.constant 0 : index
    %3 = vector.load %arg1[%c0, %c0_1, %c0_2] : memref<1x2x16xf32, #tpu.memory_space<vmem>>, vector<1x2x16xf32>
    %4 = vector.shape_cast %3 : vector<1x2x16xf32> to vector<2x16xf32>
    %c0_3 = arith.constant 0 : index
    %c0_4 = arith.constant 0 : index
    %5 = vector.load %arg10[%c0_3, %c0_4] : memref<2x32xf32, #tpu.memory_space<vmem>>, vector<2x32xf32>
    %c0_5 = arith.constant 0 : index
    %c0_6 = arith.constant 0 : index
    %6 = vector.load %arg2[%c0_5, %c0_6] : memref<16x128xf32, #tpu.memory_space<vmem>>, vector<16x128xf32>
    %cst = arith.constant dense<0.000000e+00> : vector<2x128xf32>
    %7 = tpu.matmul %4, %6, %cst {dimension_numbers = #tpu.dot_dimension_numbers<[1], [0], [0], [1], [0, 0, 1, 1], [], []>} : vector<2x16xf32>, vector<16x128xf32>, vector<2x128xf32> -> vector<2x128xf32>
    %c0_7 = arith.constant 0 : index
    %c0_8 = arith.constant 0 : index
    %8 = vector.load %arg3[%c0_7, %c0_8] : memref<32x128xf32, #tpu.memory_space<vmem>>, vector<32x128xf32>
    %cst_9 = arith.constant dense<0.000000e+00> : vector<2x128xf32>
    %9 = tpu.matmul %5, %8, %cst_9 {dimension_numbers = #tpu.dot_dimension_numbers<[1], [0], [0], [1], [0, 0, 1, 1], [], []>} : vector<2x32xf32>, vector<32x128xf32>, vector<2x128xf32> -> vector<2x128xf32>
    %10 = arith.addf %7, %9 : vector<2x128xf32>
    %c0_10 = arith.constant 0 : index
    %c0_11 = arith.constant 0 : index
    %11 = vector.load %arg4[%c0_10, %c0_11] : memref<1x128xf32, #tpu.memory_space<vmem>>, vector<1x128xf32>
    %12 = vector.broadcast %11 : vector<1x128xf32> to vector<2x128xf32>
    %13 = arith.addf %10, %12 : vector<2x128xf32>
    %14 = vector.extract_strided_slice %13 {offsets = [0, 0], sizes = [2, 32], strides = [1, 1]} : vector<2x128xf32> to vector<2x32xf32>
    %15 = arith.negf %14 : vector<2x32xf32>
    %16 = math.exp %15 : vector<2x32xf32>
    %cst_12 = arith.constant 1.000000e+00 : f32
    %17 = vector.broadcast %cst_12 : f32 to vector<2x32xf32>
    %18 = arith.addf %17, %16 : vector<2x32xf32>
    %19 = arith.divf %17, %18 : vector<2x32xf32>
    %20 = vector.extract_strided_slice %13 {offsets = [0, 32], sizes = [2, 32], strides = [1, 1]} : vector<2x128xf32> to vector<2x32xf32>
    %21 = arith.negf %20 : vector<2x32xf32>
    %22 = math.exp %21 : vector<2x32xf32>
    %cst_13 = arith.constant 1.000000e+00 : f32
    %23 = vector.broadcast %cst_13 : f32 to vector<2x32xf32>
    %24 = arith.addf %23, %22 : vector<2x32xf32>
    %25 = arith.divf %23, %24 : vector<2x32xf32>
    %26 = vector.extract_strided_slice %13 {offsets = [0, 64], sizes = [2, 32], strides = [1, 1]} : vector<2x128xf32> to vector<2x32xf32>
    %27 = math.tanh %26 : vector<2x32xf32>
    %28 = vector.extract_strided_slice %13 {offsets = [0, 96], sizes = [2, 32], strides = [1, 1]} : vector<2x128xf32> to vector<2x32xf32>
    %29 = arith.negf %28 : vector<2x32xf32>
    %30 = math.exp %29 : vector<2x32xf32>
    %cst_14 = arith.constant 1.000000e+00 : f32
    %31 = vector.broadcast %cst_14 : f32 to vector<2x32xf32>
    %32 = arith.addf %31, %30 : vector<2x32xf32>
    %33 = arith.divf %31, %32 : vector<2x32xf32>
    %c0_15 = arith.constant 0 : index
    %c0_16 = arith.constant 0 : index
    %34 = vector.load %arg11[%c0_15, %c0_16] : memref<2x32xf32, #tpu.memory_space<vmem>>, vector<2x32xf32>
    %35 = arith.mulf %25, %34 : vector<2x32xf32>
    %36 = arith.mulf %19, %27 : vector<2x32xf32>
    %37 = arith.addf %35, %36 : vector<2x32xf32>
    %38 = math.tanh %37 : vector<2x32xf32>
    %39 = arith.mulf %33, %38 : vector<2x32xf32>
    %c0_17 = arith.constant 0 : index
    %c0_18 = arith.constant 0 : index
    %40 = vector.load %arg10[%c0_17, %c0_18] : memref<2x32xf32, #tpu.memory_space<vmem>>, vector<2x32xf32>
    tpu.vector_store %arg10[%c0_17, %c0_18], %39 {strides = array<i32>} : memref<2x32xf32, #tpu.memory_space<vmem>>, vector<2x32xf32>,
    %c0_19 = arith.constant 0 : index
    %c0_20 = arith.constant 0 : index
    %41 = vector.load %arg11[%c0_19, %c0_20] : memref<2x32xf32, #tpu.memory_space<vmem>>, vector<2x32xf32>
    tpu.vector_store %arg11[%c0_19, %c0_20], %37 {strides = array<i32>} : memref<2x32xf32, #tpu.memory_space<vmem>>, vector<2x32xf32>,
    %c0_21 = arith.constant 0 : index
    %c0_22 = arith.constant 0 : index
    %c0_23 = arith.constant 0 : index
    %42 = vector.load %arg7[%c0_21, %c0_22, %c0_23] : memref<1x2x32xf32, #tpu.memory_space<vmem>>, vector<1x2x32xf32>
    %43 = vector.shape_cast %42 : vector<1x2x32xf32> to vector<2x32xf32>
    %44 = vector.shape_cast %39 : vector<2x32xf32> to vector<1x2x32xf32>
    tpu.vector_store %arg7[%c0_21, %c0_22, %c0_23], %44 {strides = array<i32>} : memref<1x2x32xf32, #tpu.memory_space<vmem>>, vector<1x2x32xf32>,
    %c0_24 = arith.constant 0 : index
    %c0_25 = arith.constant 0 : index
    %45 = vector.load %arg8[%c0_24, %c0_25] : memref<2x32xf32, #tpu.memory_space<vmem>>, vector<2x32xf32>
    tpu.vector_store %arg8[%c0_24, %c0_25], %39 {strides = array<i32>} : memref<2x32xf32, #tpu.memory_space<vmem>>, vector<2x32xf32>,
    %c0_26 = arith.constant 0 : index
    %c0_27 = arith.constant 0 : index
    %46 = vector.load %arg9[%c0_26, %c0_27] : memref<2x32xf32, #tpu.memory_space<vmem>>, vector<2x32xf32>
    tpu.vector_store %arg9[%c0_26, %c0_27], %37 {strides = array<i32>} : memref<2x32xf32, #tpu.memory_space<vmem>>, vector<2x32xf32>,
    return
  }
  func.func @transform_0(%arg0: i32) -> (i32, i32, i32) {
    %c0_i32 = arith.constant 0 : i32
    %c0_i32_0 = arith.constant 0 : i32
    %c0_i32_1 = arith.constant 0 : i32
    return %arg0, %c0_i32, %c0_i32_0 : i32, i32, i32
  }
  func.func @transform_1(%arg0: i32) -> (i32, i32) {
    %c0_i32 = arith.constant 0 : i32
    %c0_i32_0 = arith.constant 0 : i32
    %c0_i32_1 = arith.constant 0 : i32
    return %c0_i32, %c0_i32_0 : i32, i32
  }
  func.func @transform_2(%arg0: i32) -> (i32, i32) {
    %c0_i32 = arith.constant 0 : i32
    %c0_i32_0 = arith.constant 0 : i32
    %c0_i32_1 = arith.constant 0 : i32
    return %c0_i32, %c0_i32_0 : i32, i32
  }
  func.func @transform_3(%arg0: i32) -> (i32, i32) {
    %c0_i32 = arith.constant 0 : i32
    %c0_i32_0 = arith.constant 0 : i32
    %c0_i32_1 = arith.constant 0 : i32
    return %c0_i32, %c0_i32_0 : i32, i32
  }
  func.func @transform_4(%arg0: i32) -> (i32, i32) {
    %c0_i32 = arith.constant 0 : i32
    %c0_i32_0 = arith.constant 0 : i32
    %c0_i32_1 = arith.constant 0 : i32
    return %c0_i32, %c0_i32_0 : i32, i32
  }
  func.func @transform_5(%arg0: i32) -> (i32, i32) {
    %c0_i32 = arith.constant 0 : i32
    %c0_i32_0 = arith.constant 0 : i32
    %c0_i32_1 = arith.constant 0 : i32
    return %c0_i32, %c0_i32_0 : i32, i32
  }
  func.func @transform_6(%arg0: i32) -> (i32, i32, i32) {
    %c0_i32 = arith.constant 0 : i32
    %c0_i32_0 = arith.constant 0 : i32
    %c0_i32_1 = arith.constant 0 : i32
    return %arg0, %c0_i32, %c0_i32_0 : i32, i32, i32
  }
  func.func @transform_7(%arg0: i32) -> (i32, i32) {
    %c0_i32 = arith.constant 0 : i32
    %c0_i32_0 = arith.constant 0 : i32
    %c0_i32_1 = arith.constant 0 : i32
    return %c0_i32, %c0_i32_0 : i32, i32
  }
  func.func @transform_8(%arg0: i32) -> (i32, i32) {
    %c0_i32 = arith.constant 0 : i32
    %c0_i32_0 = arith.constant 0 : i32
    %c0_i32_1 = arith.constant 0 : i32
    return %c0_i32, %c0_i32_0 : i32, i32
  }
}

</mosaic_0001>

<llo_original>
// kernel: tpu_custom_call.1
$region0: #{tpu_custom_call.1}
  #allocation0 [shape = 'u32[]', space=smem, size = 0x4, offset = 0x4, fixed_abs, tag = 'smem constant byte address 0x4 - core index']
  #allocation1 [shape = 'u32[144,128]{1,0:T(1,128)}', space=vmem, size = 0x12000, scoped, tag = 'internal scratch']
  #allocation2 [shape = 'f32[2,32]{1,0:T(2,128)}', space=vmem, size = 0x400, scoped, tag = 'scratch operand']
  #allocation3 [shape = 'f32[2,32]{1,0:T(2,128)}', space=vmem, size = 0x400, scoped, tag = 'scratch operand']
  %s0 = inlined_call_operand.hbm [shape: f32[8,2,16], index: 0, kind: input, shape index: {}]
  %s1 = inlined_call_operand.hbm [shape: f32[16,128], index: 1, kind: input, shape index: {}]
  %s2 = inlined_call_operand.hbm [shape: f32[32,128], index: 2, kind: input, shape index: {}]
  %s3 = inlined_call_operand.vmem [shape: f32[1,128], index: 3, kind: input, shape index: {}]
  %s4 = inlined_call_operand.vmem [shape: f32[2,32], index: 4, kind: input, shape index: {}]
  %s5 = inlined_call_operand.vmem [shape: f32[2,32], index: 5, kind: input, shape index: {}]
  %s6 = inlined_call_operand.hbm [shape: f32[8,2,32], index: 6, kind: output, shape index: {0}]
  %s7 = inlined_call_operand.hbm [shape: f32[2,32], index: 7, kind: output, shape index: {1}]
  %s8 = inlined_call_operand.hbm [shape: f32[2,32], index: 8, kind: output, shape index: {2}]
  %9 = xla_tuple %s6, %s7, %s8
  %s10 = sld [smem:[#allocation0]]
  $region89: #{tpu_custom_call.1} parent=0
    _
  %s12 = ssub.s32 1, %s10
  %s13 = scalar_select 0, %s12, %s10
  $region1: #{tpu_custom_call.1} parent=0
    #allocation4 [shape = 'u8[2048]{0}', space=vmem, size = 0x800, scoped, tag = 'input window, operand 0']
    #allocation5 [shape = 's32[2]{0}', space=sflag, size = 0x8, scoped, tag = 'scoped memory for tpu_custom_call.1']
    #allocation6 [shape = 's32[2]{0}', space=sflag, size = 0x8, scoped, tag = 'scoped memory for tpu_custom_call.1']
    #allocation7 [shape = 'u8[8192]{0}', space=vmem, size = 0x2000, scoped, tag = 'input window, operand 1, single buffered']
    #allocation8 [shape = 's32[1]{0}', space=sflag, size = 0x4, scoped, tag = 'scoped memory for tpu_custom_call.1']
    #allocation9 [shape = 'u8[16384]{0}', space=vmem, size = 0x4000, scoped, tag = 'input window, operand 2, single buffered']
    #allocation10 [shape = 'u8[2048]{0}', space=vmem, size = 0x800, scoped, tag = 'output window, operand 0']
    #allocation11 [shape = 'u8[1024]{0}', space=vmem, size = 0x400, scoped, tag = 'output window, operand 1, single buffered']
    #allocation12 [shape = 's32[1]{0}', space=sflag, size = 0x4, scoped, tag = 'scoped memory for tpu_custom_call.1']
    #allocation13 [shape = 'u8[1024]{0}', space=vmem, size = 0x400, scoped, tag = 'output window, operand 2, single buffered']
    %14 = vsyncpa [#allocation5], 0
    %s15 = scalar_lea.sflag [#allocation5], 1
    %16 = vsyncpa %s15, 0
    %17 = vsyncpa [#allocation8], 0
    %18 = vsyncpa [#allocation6], 0
    %s19 = scalar_lea.sflag [#allocation6], 1
    %20 = vsyncpa %s19, 0
    %21 = vsyncpa [#allocation12], 0
    loop: start=0, step=1, limit=10
    $region2: #{tpu_custom_call.1} parent=1 // loop_pre_header
      _
    $region3: #{tpu_custom_call.1} parent=1 // loop_header
      %s23 = sphi 0, %s27
      %p24 = scmp.ge.s32.totalorder %s23, 10
      %s33 = sphi 0, %s35
      %s36 = sphi 0, %s33
      %s37 = sphi 0, %s36
      %s53 = sphi 0, %s37
      %s57 = sphi 0, %s57
      %s59 = sphi 0, %s57
      %s60 = sphi 0, %s59
      %s74 = sphi 0, %s60
      %s78 = sphi 0, %s78
      %s80 = sphi 0, %s78
      %s81 = sphi 0, %s80
      %s95 = sphi 0, %s81
      %s99 = sphi 0, %s99
      %s101 = sphi 0, %s99
      %s102 = sphi 0, %s101
      %s116 = sphi 0, %s102
      %s120 = sphi 0, %s120
      %s122 = sphi 0, %s120
      %s123 = sphi 0, %s122
      %s137 = sphi 0, %s123
      %s141 = sphi 0, %s141
      %s143 = sphi 0, %s141
      %s144 = sphi 0, %s143
      %s158 = sphi 0, %s144
      %s164 = sphi 0, %s166
      %s167 = sphi 0, %s164
      %s168 = sphi 0, %s167
      %s184 = sphi 0, %s168
      %s188 = sphi 0, %s188
      %s190 = sphi 0, %s188
      %s191 = sphi 0, %s190
      %s205 = sphi 0, %s191
      %s209 = sphi 0, %s209
      %s211 = sphi 0, %s209
      %s212 = sphi 0, %s211
      %s226 = sphi 0, %s212
    $region4: #{tpu_custom_call.1} parent=1 // loop_header_branch
      %26 = sbr.rel (%p24) target = $region8
    $region5: #{tpu_custom_call.1} parent=1 // loop_body
      %s28 = ssub.s32 %s23, 1
      %s29 = ssub.s32 %s23, 2
      %s30 = sadd.s32 %s23, 1
      %s31 = ssub.s32 %s23, %s30
      %p32 = scmp.eq.s32.totalorder %s31, 0
      %s34 = sadd.s32 %s33, 1
      %s35 = scalar_select %p32, %s33, %s34
      %p38 = pneg %p32
      %p39 = scmp.eq.s32.totalorder %s23, 7
      %p40 = por %p38, %p39
      %p41 = scmp.ne.s32.totalorder %s33, %s36
      %p42 = scmp.eq.s32.totalorder %s23, 0
      %p43 = por %p41, %p42
      %p44 = scmp.ne.s32.totalorder %s33, %s36
      %p45 = scmp.eq.s32.totalorder %s28, 7
      %p46 = por %p44, %p45
      %p47 = scmp.ne.s32.totalorder %s36, %s37
      %p48 = scmp.eq.s32.totalorder %s28, 0
      %p49 = por %p47, %p48
      %p50 = scmp.ne.s32.totalorder %s36, %s37
      %p51 = scmp.eq.s32.totalorder %s29, 7
      %p52 = por %p50, %p51
      %p54 = scmp.ne.s32.totalorder %s37, %s53
      %p55 = scmp.eq.s32.totalorder %s29, 0
      %p56 = por %p54, %p55
      %s58 = sadd.s32 %s57, 1
      %p61 = scmp.eq.s32.totalorder %s23, 7
      %p62 = scmp.ne.s32.totalorder %s57, %s59
      %p63 = scmp.eq.s32.totalorder %s23, 0
      %p64 = por %p62, %p63
      %p65 = scmp.ne.s32.totalorder %s57, %s59
      %p66 = scmp.eq.s32.totalorder %s28, 7
      %p67 = por %p65, %p66
      %p68 = scmp.ne.s32.totalorder %s59, %s60
      %p69 = scmp.eq.s32.totalorder %s28, 0
      %p70 = por %p68, %p69
      %p71 = scmp.ne.s32.totalorder %s59, %s60
      %p72 = scmp.eq.s32.totalorder %s29, 7
      %p73 = por %p71, %p72
      %p75 = scmp.ne.s32.totalorder %s60, %s74
      %p76 = scmp.eq.s32.totalorder %s29, 0
      %p77 = por %p75, %p76
      %s79 = sadd.s32 %s78, 1
      %p82 = scmp.eq.s32.totalorder %s23, 7
      %p83 = scmp.ne.s32.totalorder %s78, %s80
      %p84 = scmp.eq.s32.totalorder %s23, 0
      %p85 = por %p83, %p84
      %p86 = scmp.ne.s32.totalorder %s78, %s80
      %p87 = scmp.eq.s32.totalorder %s28, 7
      %p88 = por %p86, %p87
      %p89 = scmp.ne.s32.totalorder %s80, %s81
      %p90 = scmp.eq.s32.totalorder %s28, 0
      %p91 = por %p89, %p90
      %p92 = scmp.ne.s32.totalorder %s80, %s81
      %p93 = scmp.eq.s32.totalorder %s29, 7
      %p94 = por %p92, %p93
      %p96 = scmp.ne.s32.totalorder %s81, %s95
      %p97 = scmp.eq.s32.totalorder %s29, 0
      %p98 = por %p96, %p97
      %s100 = sadd.s32 %s99, 1
      %p103 = scmp.eq.s32.totalorder %s23, 7
      %p104 = scmp.ne.s32.totalorder %s99, %s101
      %p105 = scmp.eq.s32.totalorder %s23, 0
      %p106 = por %p104, %p105
      %p107 = scmp.ne.s32.totalorder %s99, %s101
      %p108 = scmp.eq.s32.totalorder %s28, 7
      %p109 = por %p107, %p108
      %p110 = scmp.ne.s32.totalorder %s101, %s102
      %p111 = scmp.eq.s32.totalorder %s28, 0
      %p112 = por %p110, %p111
      %p113 = scmp.ne.s32.totalorder %s101, %s102
      %p114 = scmp.eq.s32.totalorder %s29, 7
      %p115 = por %p113, %p114
      %p117 = scmp.ne.s32.totalorder %s102, %s116
      %p118 = scmp.eq.s32.totalorder %s29, 0
      %p119 = por %p117, %p118
      %s121 = sadd.s32 %s120, 1
      %p124 = scmp.eq.s32.totalorder %s23, 7
      %p125 = scmp.ne.s32.totalorder %s120, %s122
      %p126 = scmp.eq.s32.totalorder %s23, 0
      %p127 = por %p125, %p126
      %p128 = scmp.ne.s32.totalorder %s120, %s122
      %p129 = scmp.eq.s32.totalorder %s28, 7
      %p130 = por %p128, %p129
      %p131 = scmp.ne.s32.totalorder %s122, %s123
      %p132 = scmp.eq.s32.totalorder %s28, 0
      %p133 = por %p131, %p132
      %p134 = scmp.ne.s32.totalorder %s122, %s123
      %p135 = scmp.eq.s32.totalorder %s29, 7
      %p136 = por %p134, %p135
      %p138 = scmp.ne.s32.totalorder %s123, %s137
      %p139 = scmp.eq.s32.totalorder %s29, 0
      %p140 = por %p138, %p139
      %s142 = sadd.s32 %s141, 1
      %p145 = scmp.eq.s32.totalorder %s23, 7
      %p146 = scmp.ne.s32.totalorder %s141, %s143
      %p147 = scmp.eq.s32.totalorder %s23, 0
      %p148 = por %p146, %p147
      %p149 = scmp.ne.s32.totalorder %s141, %s143
      %p150 = scmp.eq.s32.totalorder %s28, 7
      %p151 = por %p149, %p150
      %p152 = scmp.ne.s32.totalorder %s143, %s144
      %p153 = scmp.eq.s32.totalorder %s28, 0
      %p154 = por %p152, %p153
      %p155 = scmp.ne.s32.totalorder %s143, %s144
      %p156 = scmp.eq.s32.totalorder %s29, 7
      %p157 = por %p155, %p156
      %p159 = scmp.ne.s32.totalorder %s144, %s158
      %p160 = scmp.eq.s32.totalorder %s29, 0
      %p161 = por %p159, %p160
      %s162 = ssub.s32 %s23, %s30
      %p163 = scmp.eq.s32.totalorder %s162, 0
      %s165 = sadd.s32 %s164, 1
      %s166 = scalar_select %p163, %s164, %s165
      %p169 = pneg %p163
      %p170 = scmp.eq.s32.totalorder %s23, 7
      %p171 = por %p169, %p170
      %p172 = scmp.ne.s32.totalorder %s164, %s167
      %p173 = scmp.eq.s32.totalorder %s23, 0
      %p174 = por %p172, %p173
      %p175 = scmp.ne.s32.totalorder %s164, %s167
      %p176 = scmp.eq.s32.totalorder %s28, 7
      %p177 = por %p175, %p176
      %p178 = scmp.ne.s32.totalorder %s167, %s168
      %p179 = scmp.eq.s32.totalorder %s28, 0
      %p180 = por %p178, %p179
      %p181 = scmp.ne.s32.totalorder %s167, %s168
      %p182 = scmp.eq.s32.totalorder %s29, 7
      %p183 = por %p181, %p182
      %p185 = scmp.ne.s32.totalorder %s168, %s184
      %p186 = scmp.eq.s32.totalorder %s29, 0
      %p187 = por %p185, %p186
      %s189 = sadd.s32 %s188, 1
      %p192 = scmp.eq.s32.totalorder %s23, 7
      %p193 = scmp.ne.s32.totalorder %s188, %s190
      %p194 = scmp.eq.s32.totalorder %s23, 0
      %p195 = por %p193, %p194
      %p196 = scmp.ne.s32.totalorder %s188, %s190
      %p197 = scmp.eq.s32.totalorder %s28, 7
      %p198 = por %p196, %p197
      %p199 = scmp.ne.s32.totalorder %s190, %s191
      %p200 = scmp.eq.s32.totalorder %s28, 0
      %p201 = por %p199, %p200
      %p202 = scmp.ne.s32.totalorder %s190, %s191
      %p203 = scmp.eq.s32.totalorder %s29, 7
      %p204 = por %p202, %p203
      %p206 = scmp.ne.s32.totalorder %s191, %s205
      %p207 = scmp.eq.s32.totalorder %s29, 0
      %p208 = por %p206, %p207
      %s210 = sadd.s32 %s209, 1
      %p213 = scmp.eq.s32.totalorder %s23, 7
      %p214 = scmp.ne.s32.totalorder %s209, %s211
      %p215 = scmp.eq.s32.totalorder %s23, 0
      %p216 = por %p214, %p215
      %p217 = scmp.ne.s32.totalorder %s209, %s211
      %p218 = scmp.eq.s32.totalorder %s28, 7
      %p219 = por %p217, %p218
      %p220 = scmp.ne.s32.totalorder %s211, %s212
      %p221 = scmp.eq.s32.totalorder %s28, 0
      %p222 = por %p220, %p221
      %p223 = scmp.ne.s32.totalorder %s211, %s212
      %p224 = scmp.eq.s32.totalorder %s29, 7
      %p225 = por %p223, %p224
      %p227 = scmp.ne.s32.totalorder %s212, %s226
      %p228 = scmp.eq.s32.totalorder %s29, 0
      %p229 = por %p227, %p228
      %p230 = scmp.le.s32.totalorder 1, %s23
      %p231 = scmp.lt.s32.totalorder %s23, 9
      %p232 = pnand %p230, %p231
      %p233 = pneg %p232
      // Predicated region
      $region9: #{tpu_custom_call.1} parent=5 // pred_check
        _
      $region10: #{tpu_custom_call.1} parent=5 // pred_check_branch
        %235 = sbr.rel (%p232) target = $region12
      $region11: #{tpu_custom_call.1} parent=5 // pred_region
        %s236 = ssub.s32 %s23, 1
        // Predicated region
        $region13: #{tpu_custom_call.1} parent=11 // pred_check
          %p237 = pneg %p70
        $region14: #{tpu_custom_call.1} parent=11 // pred_check_branch
          %239 = sbr.rel (%p237) target = $region16
        $region15: #{tpu_custom_call.1} parent=11 // pred_region
          %s241 = ssub.s32 256, 256
          %242 = vsyncadd [#allocation8], %s241
          %s243 = sshll.u32 [#allocation7], 4
          %s244 = int_to_ptr.vmem [resolvable:$true] %s243
          %249 = dma.hbm_to_vmem [thread:$0]  %s1, 256, %s244, [#allocation8], 128, 128, 8
        $region16: #{tpu_custom_call.1} parent=11 // pred_fallthru
          _
        // Predicated region
        $region17: #{tpu_custom_call.1} parent=11 // pred_check
          %p250 = pneg %p91
        $region18: #{tpu_custom_call.1} parent=11 // pred_check_branch
          %252 = sbr.rel (%p250) target = $region20
        $region19: #{tpu_custom_call.1} parent=11 // pred_region
          %s254 = ssub.s32 512, 512
          %255 = vsyncadd [#allocation8], %s254
          %s256 = sshll.u32 [#allocation9], 4
          %s257 = int_to_ptr.vmem [resolvable:$true] %s256
          %262 = dma.hbm_to_vmem [thread:$0]  %s2, 512, %s257, [#allocation8], 128, 128, 8
        $region20: #{tpu_custom_call.1} parent=11 // pred_fallthru
          _
        // Predicated region
        $region21: #{tpu_custom_call.1} parent=11 // pred_check
          %p263 = pneg %p112
        $region22: #{tpu_custom_call.1} parent=11 // pred_check_branch
          %265 = sbr.rel (%p263) target = $region24
        $region23: #{tpu_custom_call.1} parent=11 // pred_region
          _
        $region24: #{tpu_custom_call.1} parent=11 // pred_fallthru
          _
        // Predicated region
        $region25: #{tpu_custom_call.1} parent=11 // pred_check
          %p266 = pneg %p133
        $region26: #{tpu_custom_call.1} parent=11 // pred_check_branch
          %268 = sbr.rel (%p266) target = $region28
        $region27: #{tpu_custom_call.1} parent=11 // pred_region
          _
        $region28: #{tpu_custom_call.1} parent=11 // pred_fallthru
          _
        // Predicated region
        $region29: #{tpu_custom_call.1} parent=11 // pred_check
          %p269 = pneg %p154
        $region30: #{tpu_custom_call.1} parent=11 // pred_check_branch
          %271 = sbr.rel (%p269) target = $region32
        $region31: #{tpu_custom_call.1} parent=11 // pred_region
          _
        $region32: #{tpu_custom_call.1} parent=11 // pred_fallthru
          _
      $region12: #{tpu_custom_call.1} parent=5 // pred_fallthru
        _
      %p272 = scmp.lt.s32.totalorder %s23, 8
      // Predicated region
      $region33: #{tpu_custom_call.1} parent=5 // pred_check
        %p273 = pneg %p272
      $region34: #{tpu_custom_call.1} parent=5 // pred_check_branch
        %275 = sbr.rel (%p273) target = $region36
      $region35: #{tpu_custom_call.1} parent=5 // pred_region
        // Predicated region
        $region37: #{tpu_custom_call.1} parent=35 // pred_check
          %p276 = pneg %p43
        $region38: #{tpu_custom_call.1} parent=35 // pred_check_branch
          %278 = sbr.rel (%p276) target = $region40
        $region39: #{tpu_custom_call.1} parent=35 // pred_region
          %s279 = sand.u32 %s33, 1
          %s280 = scalar_lea.sflag [#allocation5], %s279
          %s281 = sand.u32 %s33, 1
          %s282 = smul.addr %s281, 2
          %s283 = scalar_lea.vmem [#allocation4], %s282
          %s285 = ssub.s32 32, 32
          %286 = vsyncadd %s280, %s285
          %s287 = smul.addr %s23, 32
          %s288 = scalar_lea.hbm %s0, %s287
          %s290 = sshll.u32 %s283, 4
          %s291 = int_to_ptr.vmem [resolvable:$true] %s290
          %293 = dma.hbm_to_vmem [thread:$0]  %s288, 32, %s291, %s280
        $region40: #{tpu_custom_call.1} parent=35 // pred_fallthru
          _
      $region36: #{tpu_custom_call.1} parent=5 // pred_fallthru
        _
      %p294 = scmp.le.s32.totalorder 1, %s23
      %p295 = scmp.lt.s32.totalorder %s23, 9
      %p296 = pnand %p294, %p295
      %p297 = pneg %p296
      // Predicated region
      $region41: #{tpu_custom_call.1} parent=5 // pred_check
        _
      $region42: #{tpu_custom_call.1} parent=5 // pred_check_branch
        %299 = sbr.rel (%p296) target = $region44
      $region43: #{tpu_custom_call.1} parent=5 // pred_region
        %s300 = ssub.s32 %s23, 1
        %s301 = sand.u32 %s36, 1
        %s302 = scalar_lea.sflag [#allocation5], %s301
        %s303 = sand.u32 %s36, 1
        %s304 = smul.addr %s303, 2
        %s305 = scalar_lea.vmem [#allocation4], %s304
        // Predicated region
        $region45: #{tpu_custom_call.1} parent=43 // pred_check
          %p306 = pneg %p49
        $region46: #{tpu_custom_call.1} parent=43 // pred_check_branch
          %308 = sbr.rel (%p306) target = $region48
        $region47: #{tpu_custom_call.1} parent=43 // pred_region
          %309 = dma.done %s302, 32
        $region48: #{tpu_custom_call.1} parent=43 // pred_fallthru
          _
        // Predicated region
        $region49: #{tpu_custom_call.1} parent=43 // pred_check
          %p310 = pneg %p70
        $region50: #{tpu_custom_call.1} parent=43 // pred_check_branch
          %312 = sbr.rel (%p310) target = $region52
        $region51: #{tpu_custom_call.1} parent=43 // pred_region
          %313 = dma.done [#allocation8], 256
        $region52: #{tpu_custom_call.1} parent=43 // pred_fallthru
          _
        // Predicated region
        $region53: #{tpu_custom_call.1} parent=43 // pred_check
          %p314 = pneg %p91
        $region54: #{tpu_custom_call.1} parent=43 // pred_check_branch
          %316 = sbr.rel (%p314) target = $region56
        $region55: #{tpu_custom_call.1} parent=43 // pred_region
          %317 = dma.done [#allocation8], 512
        $region56: #{tpu_custom_call.1} parent=43 // pred_fallthru
          _
        %s318 = sand.u32 %s36, 1
        %s319 = scalar_lea.sflag [#allocation5], %s318
        %s320 = sand.u32 %s36, 1
        %s321 = smul.addr %s320, 2
        %s322 = scalar_lea.vmem [#allocation4], %s321
        %p323 = pneg %p49
        %p324 = pneg %p46
        %p325 = pneg %p70
        %p326 = pneg %p67
        %p327 = pneg %p91
        %p328 = pneg %p88
        %p329 = pneg %p112
        %p330 = pneg %p109
        %p331 = pneg %p133
        %p332 = pneg %p130
        %p333 = pneg %p154
        %p334 = pneg %p151
        %p335 = pneg %p180
        %p336 = pneg %p177
        %s337 = sand.u32 %s167, 1
        %s338 = scalar_lea.sflag [#allocation6], %s337
        %s339 = sand.u32 %s167, 1
        %s340 = smul.addr %s339, 2
        %s341 = scalar_lea.vmem [#allocation10], %s340
        %p342 = pneg %p201
        %p343 = pneg %p198
        %p344 = pneg %p222
        %p345 = pneg %p219
        %p346 = scmp.eq.s32.totalorder %s28, 0
        // Predicated region
        $region57: #{tpu_custom_call.1} parent=43 // pred_check
          %p347 = pneg %p346
        $region58: #{tpu_custom_call.1} parent=43 // pred_check_branch
          %349 = sbr.rel (%p347) target = $region60
        $region59: #{tpu_custom_call.1} parent=43 // pred_region
          %v350 = vld [vmem:[%s4] sm:$0x3]
          %vm351 = vcmask 254976
          %352 = vst.msk [vmem:[#allocation2] sm:$0x3] %vm351, %v350
          %v353 = vld [vmem:[%s5] sm:$0x3]
          %354 = vst.msk [vmem:[#allocation3] sm:$0x3] %vm351, %v353
        $region60: #{tpu_custom_call.1} parent=43 // pred_fallthru
          _
        %v355 = vld [vmem:[%s305] sm:$0x3]
        %v356 = vld [vmem:[#allocation2] sm:$0x3]
        %v357 = vld [vmem:[#allocation7] sm:$0xff]
        %v358 = vld [vmem:[#allocation7 + $0x8] sm:$0xff]
        %v359 = vld [vmem:[#allocation9] sm:$0xff]
        %v360 = vld [vmem:[#allocation9 + $0x8] sm:$0xff]
        %v361 = vld [vmem:[#allocation9 + $0x10] sm:$0xff]
        %v362 = vld [vmem:[#allocation9 + $0x18] sm:$0xff]
        %vm363 = vcmask 261120
        %v365 = vsel %vm363, %v356, 0
        %367 = vmatprep.subr.mxu0 0.0
        %368 = vmatpush1.msra.mxu0 %v359
        %369 = vmatprep.subr.mxu0 0.0
        %370 = vmatpush1.msra.mxu0 %v360
        %371 = vmatprep.subr.mxu0 0.0
        %372 = vmatpush1.msra.mxu0 %v361
        %373 = vmatprep.subr.mxu0 0.0
        %374 = vmatpush1.msra.mxu0 %v362
        %375 = vmatprep.subr.mxu0 0.0
        %376 = vmatpush1.msra.mxu0 0.0
        %377 = vmatprep.subr.mxu0 0.0
        %378 = vmatpush1.msra.mxu0 0.0
        %379 = vmatprep.subr.mxu0 0.0
        %380 = vmatpush1.msra.mxu0 0.0
        %381 = vmatprep.subr.mxu0 0.0
        %382 = vmatpush1.msra.mxu0 0.0
        %383 = vmatprep.subr.mxu0 0.0
        %384 = vmatpush1.msra.mxu0 0.0
        %385 = vmatprep.subr.mxu0 0.0
        %386 = vmatpush1.msra.mxu0 0.0
        %387 = vmatprep.subr.mxu0 0.0
        %388 = vmatpush1.msra.mxu0 0.0
        %389 = vmatprep.subr.mxu0 0.0
        %390 = vmatpush1.msra.mxu0 0.0
        %391 = vmatprep.subr.mxu0 0.0
        %392 = vmatpush1.msra.mxu0 0.0
        %393 = vmatprep.subr.mxu0 0.0
        %394 = vmatpush1.msra.mxu0 0.0
        %395 = vmatprep.subr.mxu0 0.0
        %396 = vmatpush1.msra.mxu0 0.0
        %397 = vmatprep.subr.mxu0 0.0
        %398 = vmatpush1.msra.mxu0 0.0
        %399 = vmatprep.subr.mxu0 0.0
        %400 = vmatpush1.msra.mxu0 0.0
        %401 = vmatprep.subr.mxu0 0.0
        %402 = vmatpush1.msra.mxu0 0.0
        %403 = vmatprep.subr.mxu0 0.0
        %404 = vmatpush1.msra.mxu0 0.0
        %405 = vmatprep.subr.mxu0 0.0
        %406 = vmatpush1.msra.mxu0 0.0
        %407 = vmatprep.subr.mxu0 0.0
        %408 = vmatpush1.msra.mxu0 0.0
        %409 = vmatprep.subr.mxu0 0.0
        %410 = vmatpush1.msra.mxu0 0.0
        %411 = vmatprep.subr.mxu0 0.0
        %412 = vmatpush1.msra.mxu0 0.0
        %413 = vmatprep.subr.mxu0 0.0
        %414 = vmatpush1.msra.mxu0 0.0
        %415 = vmatprep.subr.mxu0 0.0
        %416 = vmatpush1.msra.mxu0 0.0
        %417 = vmatprep.subr.mxu0 0.0
        %418 = vmatpush1.msra.mxu0 0.0
        %419 = vmatprep.subr.mxu0 0.0
        %420 = vmatpush1.msra.mxu0 0.0
        %421 = vmatprep.subr.mxu0 0.0
        %422 = vmatpush1.msra.mxu0 0.0
        %423 = vmatprep.subr.mxu0 0.0
        %424 = vmatpush1.msra.mxu0 0.0
        %425 = vmatprep.subr.mxu0 0.0
        %426 = vmatpush1.msra.mxu0 0.0
        %427 = vmatprep.subr.mxu0 0.0
        %428 = vmatpush1.msra.mxu0 0.0
        %429 = vmatprep.subr.mxu0 0.0
        %430 = vmatpush1.msra.mxu0 0.0
        %431 = vmatprep.mubr.f32.mxu0 0.0
        %432 = vmatmul.mubr.f32.gmra.mrb[0].mxu0 %v365
        %v433 = vpop.f32.mrb[0].mxu0
        %v434 = vadd.f32 0.0, %v433
        %v435 = vpop.f32.mrb[0].mxu0
        %436 = vdwg.mxu0
        %vm437 = vcmask 130048
        %v439 = vsel %vm437, %v355, 0
        %441 = vmatprep.subr.mxu0 0.0
        %442 = vmatpush1.msra.mxu0 %v357
        %443 = vmatprep.subr.mxu0 0.0
        %444 = vmatpush1.msra.mxu0 %v358
        %445 = vmatprep.subr.mxu0 0.0
        %446 = vmatpush1.msra.mxu0 0.0
        %447 = vmatprep.subr.mxu0 0.0
        %448 = vmatpush1.msra.mxu0 0.0
        %449 = vmatprep.subr.mxu0 0.0
        %450 = vmatpush1.msra.mxu0 0.0
        %451 = vmatprep.subr.mxu0 0.0
        %452 = vmatpush1.msra.mxu0 0.0
        %453 = vmatprep.subr.mxu0 0.0
        %454 = vmatpush1.msra.mxu0 0.0
        %455 = vmatprep.subr.mxu0 0.0
        %456 = vmatpush1.msra.mxu0 0.0
        %457 = vmatprep.subr.mxu0 0.0
        %458 = vmatpush1.msra.mxu0 0.0
        %459 = vmatprep.subr.mxu0 0.0
        %460 = vmatpush1.msra.mxu0 0.0
        %461 = vmatprep.subr.mxu0 0.0
        %462 = vmatpush1.msra.mxu0 0.0
        %463 = vmatprep.subr.mxu0 0.0
        %464 = vmatpush1.msra.mxu0 0.0
        %465 = vmatprep.subr.mxu0 0.0
        %466 = vmatpush1.msra.mxu0 0.0
        %467 = vmatprep.subr.mxu0 0.0
        %468 = vmatpush1.msra.mxu0 0.0
        %469 = vmatprep.subr.mxu0 0.0
        %470 = vmatpush1.msra.mxu0 0.0
        %471 = vmatprep.subr.mxu0 0.0
        %472 = vmatpush1.msra.mxu0 0.0
        %473 = vmatprep.subr.mxu0 0.0
        %474 = vmatpush1.msra.mxu0 0.0
        %475 = vmatprep.subr.mxu0 0.0
        %476 = vmatpush1.msra.mxu0 0.0
        %477 = vmatprep.subr.mxu0 0.0
        %478 = vmatpush1.msra.mxu0 0.0
        %479 = vmatprep.subr.mxu0 0.0
        %480 = vmatpush1.msra.mxu0 0.0
        %481 = vmatprep.subr.mxu0 0.0
        %482 = vmatpush1.msra.mxu0 0.0
        %483 = vmatprep.subr.mxu0 0.0
        %484 = vmatpush1.msra.mxu0 0.0
        %485 = vmatprep.subr.mxu0 0.0
        %486 = vmatpush1.msra.mxu0 0.0
        %487 = vmatprep.subr.mxu0 0.0
        %488 = vmatpush1.msra.mxu0 0.0
        %489 = vmatprep.subr.mxu0 0.0
        %490 = vmatpush1.msra.mxu0 0.0
        %491 = vmatprep.subr.mxu0 0.0
        %492 = vmatpush1.msra.mxu0 0.0
        %493 = vmatprep.subr.mxu0 0.0
        %494 = vmatpush1.msra.mxu0 0.0
        %495 = vmatprep.subr.mxu0 0.0
        %496 = vmatpush1.msra.mxu0 0.0
        %497 = vmatprep.subr.mxu0 0.0
        %498 = vmatpush1.msra.mxu0 0.0
        %499 = vmatprep.subr.mxu0 0.0
        %500 = vmatpush1.msra.mxu0 0.0
        %501 = vmatprep.subr.mxu0 0.0
        %502 = vmatpush1.msra.mxu0 0.0
        %503 = vmatprep.subr.mxu0 0.0
        %504 = vmatpush1.msra.mxu0 0.0
        %505 = vmatprep.mubr.f32.mxu0 0.0
        %506 = vmatmul.mubr.f32.gmra.mrb[0].mxu0 %v439
        %v507 = vpop.f32.mrb[0].mxu0
        %v508 = vadd.f32 %v434, %v507
        %v509 = vpop.f32.mrb[0].mxu0
        %510 = vdwg.mxu0
        %v511 = vld [vmem:[%s3] sm:$0x1]
        %v513 = vlaneseq
        %v514 = vshrl.u32 %v513, 7
        %v515 = vsub.s32 0, %v514
        %v516 = vrot.slane %v511, %v515
        %v518 = vadd.f32 %v508, %v516
        %v519 = vxor.u32 %v518, 2147483648
        %v520 = vmul.f32 %v519, 1.442695
        %v521 = vpow.pop %v520
        %v522 = vadd.f32 %v521, 1.0
        %v523 = vrcp.pop %v522
        %v524 = vmul.f32 1.0, %v523
        %v525 = vtanh.pop %v518
        %v526 = vld [vmem:[#allocation3] sm:$0x3]
        %528 = vrot.lane.b32.xlu0 %v526, 32
        %v529 = vpop.permute.xlu0 %528
        %v531 = vmul.f32 %v524, %v529
        %533 = vrot.lane.b32.xlu0 %v525, 64
        %v534 = vpop.permute.xlu0 %533
        %v536 = vmul.f32 %v524, %v534
        %538 = vrot.lane.b32.xlu0 %v536, 32
        %v539 = vpop.permute.xlu0 %538
        %v541 = vadd.f32 %v531, %v539
        %v542 = vtanh.pop %v541
        %544 = vrot.lane.b32.xlu0 %v542, 64
        %v545 = vpop.permute.xlu0 %544
        %v547 = vmul.f32 %v524, %v545
        %549 = vrot.lane.b32.xlu0 %v547, 32
        %v550 = vpop.permute.xlu0 %549
        %vm552 = vcmask 254976
        %553 = vst.msk [vmem:[#allocation2] sm:$0x3] %vm552, %v550
        %555 = vrot.lane.b32.xlu0 %v541, 96
        %v556 = vpop.permute.xlu0 %555
        %558 = vst.msk [vmem:[#allocation3] sm:$0x3] %vm552, %v556
        %559 = vst.msk [vmem:[%s341] sm:$0x3] %vm552, %v550
        %560 = vst.msk [vmem:[#allocation11] sm:$0x3] %vm552, %v550
        %561 = vst.msk [vmem:[#allocation13] sm:$0x3] %vm552, %v556
        %s562 = sand.u32 %s167, 1
        %s563 = scalar_lea.sflag [#allocation6], %s562
        %s564 = sand.u32 %s167, 1
        %s565 = smul.addr %s564, 2
        %s566 = scalar_lea.vmem [#allocation10], %s565
        // Predicated region
        $region61: #{tpu_custom_call.1} parent=43 // pred_check
          %p567 = pneg %p177
        $region62: #{tpu_custom_call.1} parent=43 // pred_check_branch
          %569 = sbr.rel (%p567) target = $region64
        $region63: #{tpu_custom_call.1} parent=43 // pred_region
          %s571 = ssub.s32 32, 32
          %572 = vsyncadd %s563, %s571
          %s573 = smul.addr %s28, 32
          %s574 = scalar_lea.hbm %s6, %s573
          %s576 = sshll.u32 %s566, 4
          %s577 = int_to_ptr.vmem [resolvable:$true] %s576
          %579 = dma.vmem_to_hbm [thread:$0]  %s577, 32, %s574, %s563
        $region64: #{tpu_custom_call.1} parent=43 // pred_fallthru
          _
        // Predicated region
        $region65: #{tpu_custom_call.1} parent=43 // pred_check
          %p580 = pneg %p198
        $region66: #{tpu_custom_call.1} parent=43 // pred_check_branch
          %582 = sbr.rel (%p580) target = $region68
        $region67: #{tpu_custom_call.1} parent=43 // pred_region
          %s584 = ssub.s32 32, 32
          %585 = vsyncadd [#allocation12], %s584
          %s587 = sshll.u32 [#allocation11], 4
          %s588 = int_to_ptr.vmem [resolvable:$true] %s587
          %590 = dma.vmem_to_hbm [thread:$0]  %s588, 32, %s7, [#allocation12]
        $region68: #{tpu_custom_call.1} parent=43 // pred_fallthru
          _
        // Predicated region
        $region69: #{tpu_custom_call.1} parent=43 // pred_check
          %p591 = pneg %p219
        $region70: #{tpu_custom_call.1} parent=43 // pred_check_branch
          %593 = sbr.rel (%p591) target = $region72
        $region71: #{tpu_custom_call.1} parent=43 // pred_region
          %s595 = ssub.s32 32, 32
          %596 = vsyncadd [#allocation12], %s595
          %s598 = sshll.u32 [#allocation13], 4
          %s599 = int_to_ptr.vmem [resolvable:$true] %s598
          %601 = dma.vmem_to_hbm [thread:$0]  %s599, 32, %s8, [#allocation12]
        $region72: #{tpu_custom_call.1} parent=43 // pred_fallthru
          _
        // Predicated region
        $region73: #{tpu_custom_call.1} parent=43 // pred_check
          %p602 = pneg %p198
        $region74: #{tpu_custom_call.1} parent=43 // pred_check_branch
          %604 = sbr.rel (%p602) target = $region76
        $region75: #{tpu_custom_call.1} parent=43 // pred_region
          %605 = dma.done [#allocation12], 32
        $region76: #{tpu_custom_call.1} parent=43 // pred_fallthru
          _
        // Predicated region
        $region77: #{tpu_custom_call.1} parent=43 // pred_check
          %p606 = pneg %p219
        $region78: #{tpu_custom_call.1} parent=43 // pred_check_branch
          %608 = sbr.rel (%p606) target = $region80
        $region79: #{tpu_custom_call.1} parent=43 // pred_region
          %609 = dma.done [#allocation12], 32
        $region80: #{tpu_custom_call.1} parent=43 // pred_fallthru
          _
      $region44: #{tpu_custom_call.1} parent=5 // pred_fallthru
        _
      %p610 = scmp.le.s32.totalorder 2, %s23
      // Predicated region
      $region81: #{tpu_custom_call.1} parent=5 // pred_check
        %p611 = pneg %p610
      $region82: #{tpu_custom_call.1} parent=5 // pred_check_branch
        %613 = sbr.rel (%p611) target = $region84
      $region83: #{tpu_custom_call.1} parent=5 // pred_region
        %s614 = ssub.s32 %s23, 2
        // Predicated region
        $region85: #{tpu_custom_call.1} parent=83 // pred_check
          %p615 = pneg %p183
        $region86: #{tpu_custom_call.1} parent=83 // pred_check_branch
          %617 = sbr.rel (%p615) target = $region88
        $region87: #{tpu_custom_call.1} parent=83 // pred_region
          %s618 = sand.u32 %s168, 1
          %s619 = scalar_lea.sflag [#allocation6], %s618
          %s620 = sand.u32 %s168, 1
          %s621 = smul.addr %s620, 2
          %s622 = scalar_lea.vmem [#allocation10], %s621
          %623 = dma.done %s619, 32
        $region88: #{tpu_custom_call.1} parent=83 // pred_fallthru
          _
      $region84: #{tpu_custom_call.1} parent=5 // pred_fallthru
        _
    $region6: #{tpu_custom_call.1} parent=1 // loop_footer
      %s27 = sadd.s32 1, %s23
    $region7: #{tpu_custom_call.1} parent=1 // loop_footer_branch
      %22 = sbr.rel target = $region3
    $region8: #{tpu_custom_call.1} parent=1 // loop_exit
      _
    %624 = vsyncpa [#allocation5], 1
    %s625 = scalar_lea.sflag [#allocation5], 1
    %626 = vsyncpa %s625, 1
    %627 = vsyncpa [#allocation8], 1
    %628 = vsyncpa [#allocation6], 1
    %s629 = scalar_lea.sflag [#allocation6], 1
    %630 = vsyncpa %s629, 1
    %631 = vsyncpa [#allocation12], 1

</llo_original>
